<compile_context>
chip_gen: v7x
topology: tpu7x:2x2x1
jax: 0.10.0
libtpu: 0.0.40
codegen_flags: <defaults>
</compile_context>

<pallas_src>
import functools
import numpy as np

import jax
import jax.numpy as jnp
from jax.experimental import pallas as pl
from jax.experimental.pallas import tpu as pltpu


def _mha_kernel(x_ref,        # (M, d_model)          bf16  (M = block_b * L)
                wqkv_ref,     # (d_model, 2*d_qk+d_v) bf16  [Wq|Wk|Wv]
                wo_ref,       # (d_v, d_v)            f32
                ball_ref,     # (1, 2*d_qk+2*d_v)     f32   [bq|bk|bv|bo]
                pool_ref,     # (d_qk, h)             f32   head pooling * 1/sqrt(d_k)
                expand_ref,   # (h, d_v)              f32   head expansion
                rrep_ref,     # (M, block_b)          f32   repeat batch row across its L rows
                segt_ref,     # (block_b, M)          f32   per-batch segment sum
                sel_ref,      # (block_b, M)          f32   one-hot: pick the level row
                rlvl_ref,     # (M, block_b)          f32   one-hot: scatter to the level row
                out_ref,      # (M, d_v)              f32
                psum_ref,     # (block_b, L)          f32
                *, h, L, block_b, d_qk, d_v):
    C = 2 * d_qk + d_v
    M = block_b * L

    b_all = ball_ref[...]
    b_qkv = b_all[:, :C]                                   # (1, C)
    b_o = b_all[:, C:]                                     # (1, d_v)

    # Fused Q|K|V projection for every (batch, level) row: ONE MXU matmul,
    # bf16 operands, f32 accumulation (review #1).
    qkv = jnp.dot(x_ref[...], wqkv_ref[...],
                  preferred_element_type=jnp.float32) + b_qkv        # (M, C)
    q_all = qkv[:, :d_qk]                                            # (M, d_qk)
    k_all = qkv[:, d_qk:2 * d_qk]                                    # (M, d_qk)
    v_all = qkv[:, 2 * d_qk:]                                        # (M, d_v)

    # With mask_matrix=None only ONE query row per batch element survives the
    # one-hot hierarchy mask.  Select it (sel) and replicate it across that
    # batch's L key rows (rrep) with dense one-hot matmuls — no SMEM-scalar
    # gathers, no dynamic indexing (reviews #1/#3).
    q_sel = jnp.dot(sel_ref[...], q_all,
                    preferred_element_type=jnp.float32)              # (block_b, d_qk)
    q_full = jnp.dot(rrep_ref[...], q_sel,
                     preferred_element_type=jnp.float32)             # (M, d_qk)

    # Scores for all batches and heads at once; pool_ref already carries the
    # 1/sqrt(d_k) scale (reviews #2/#4).
    s = jnp.dot(q_full * k_all, pool_ref[...],
                preferred_element_type=jnp.float32)                  # (M, h)

    # Batched softmax over the keys of each batch element via a
    # (block_b, L, h) view (review #2).
    s3 = s.reshape(block_b, L, h)
    m = jnp.max(s3, axis=1, keepdims=True)                           # (block_b, 1, h)
    e = jnp.exp(s3 - m)
    denom = jnp.sum(e, axis=1, keepdims=True)                        # (block_b, 1, h)
    p3 = e * pl.reciprocal(denom, approx=True)                       # (block_b, L, h)

    # p_attn.sum(dim=query).mean(heads): only the selected query row is
    # non-zero, so this is the head-mean of the softmax row — already in
    # (block_b, L) orientation, no in-kernel transpose (review #6).
    psum_ref[...] = jnp.sum(p3, axis=-1) * (1.0 / h)

    # P @ V for all batches/heads: broadcast each head's weight over its value
    # lanes (expand), reduce over keys with the segment-sum matmul (review #2).
    p = p3.reshape(M, h)
    w_full = jnp.dot(p, expand_ref[...],
                     preferred_element_type=jnp.float32)             # (M, d_v)
    ctx = jnp.dot(segt_ref[...], w_full * v_all,
                  preferred_element_type=jnp.float32)                # (block_b, d_v)

    # Output projection of the selected rows, scattered back with a one-hot
    # matmul; every other row is exactly the output bias.  One contiguous
    # (M, d_v) store (review #3).
    o_proj = jnp.dot(ctx, wo_ref[...],
                     preferred_element_type=jnp.float32)             # (block_b, d_v)
    out_ref[...] = jnp.dot(rlvl_ref[...], o_proj,
                           preferred_element_type=jnp.float32) + b_o  # (M, d_v)


def multi_headed_attention(x, params, hierchy_struc, h, block_b=None):
    """x: (B, L, d_model) f32.  Returns (out (B, L, d_v), p_attn_sum (B, L))."""
    wq, bq, wk, bk, wv, bv, wo, bo = params
    B, L, d_model = x.shape
    d_qk = wq.shape[1]
    d_v = wv.shape[1]
    assert d_qk % h == 0 and d_v % h == 0
    assert sum(hierchy_struc) == B and len(hierchy_struc) <= L

    # Per-batch hierarchy level (the only query row surviving the mask).
    levels = np.zeros((B,), np.int32)
    idx = 0
    for i, j in enumerate(hierchy_struc):
        levels[idx:idx + j] = i
        idx += j

    # Batch blocking.  Default: ONE grid step — per-step overhead (~0.35us)
    # dwarfs the compute at these sizes (review #7).  Only split the batch
    # axis when the streamed x/out block would exceed ~4 MiB per buffer
    # (keeps v5e's 16 MiB / v7x's 32 MiB scoped-VMEM defaults safe with
    # double buffering, reviews #8/#9); the axis stays "parallel" so multi-TC
    # parts (v7x) can shard it when it is split.
    if block_b is None:
        block_b = B
        bytes_per_row = d_model * 2 + d_v * 4              # bf16 x + f32 out
        max_rows = (4 << 20) // max(bytes_per_row, 1)
        if B * L > max_rows:
            for cand in range(B // 2, 0, -1):
                if B % cand == 0 and (cand * L) % 8 == 0 and cand * L <= max_rows:
                    block_b = cand
                    break
    assert B % block_b == 0
    nb = B // block_b
    M = block_b * L
    if nb > 1:
        # (8, 128) sublane rule for the partial x/out blocks.
        assert M % 8 == 0, "block_b*L must be a multiple of 8 when splitting the batch axis"

    C = 2 * d_qk + d_v
    dq_h, dv_h = d_qk // h, d_v // h

    # ---- constants hoisted out of the kernel (DMA'd once, VMEM resident) ----
    # Head pooling (1/sqrt(d_k) scale folded in) and head expansion matrices.
    pool = np.zeros((d_qk, h), np.float32)
    pool[np.arange(d_qk), np.arange(d_qk) // dq_h] = 1.0 / np.sqrt(dq_h)
    expand = np.zeros((h, d_v), np.float32)
    expand[np.arange(d_v) // dv_h, np.arange(d_v)] = 1.0
    # Segment replicate / segment-sum matrices over the (batch, level) rows.
    rrep = np.zeros((M, block_b), np.float32)
    rrep[np.arange(M), np.arange(M) // L] = 1.0
    segt = np.ascontiguousarray(rrep.T)
    # Level-dependent one-hot select / scatter matrices, one per grid step.
    sel = np.zeros((nb, block_b, M), np.float32)
    rlvl = np.zeros((nb, M, block_b), np.float32)
    for i in range(nb):
        for bb in range(block_b):
            lvl = int(levels[i * block_b + bb])
            sel[i, bb, bb * L + lvl] = 1.0
            rlvl[i, bb * L + lvl, bb] = 1.0

    # Fused weights / biases; x streamed as bf16 (review #5).
    wqkv = jnp.concatenate([wq, wk, wv], axis=1).astype(jnp.bfloat16)       # (d_model, C)
    b_all = jnp.concatenate([bq, bk, bv, bo], axis=1).astype(jnp.float32)   # (1, C + d_v)
    x_flat = x.reshape(B * L, d_model).astype(jnp.bfloat16)

    kernel = functools.partial(_mha_kernel, h=h, L=L, block_b=block_b,
                               d_qk=d_qk, d_v=d_v)
    const2 = lambda i: (0, 0)

    out_flat, psum3 = pl.pallas_call(
        kernel,
        out_shape=(jax.ShapeDtypeStruct((B * L, d_v), jnp.float32),
                   jax.ShapeDtypeStruct((nb, block_b, L), jnp.float32)),
        grid_spec=pltpu.PrefetchScalarGridSpec(
            num_scalar_prefetch=0,
            grid=(nb,),
            in_specs=[
                pl.BlockSpec((M, d_model), lambda i: (i, 0)),           # x rows (streamed)
                pl.BlockSpec((d_model, C), const2),                     # [Wq|Wk|Wv]
                pl.BlockSpec((d_v, d_v), const2),                       # Wo
                pl.BlockSpec((1, C + d_v), const2),                     # [bq|bk|bv|bo]
                pl.BlockSpec((d_qk, h), const2),                        # pool (scaled)
                pl.BlockSpec((h, d_v), const2),                         # expand
                pl.BlockSpec((M, block_b), const2),                     # rrep
                pl.BlockSpec((block_b, M), const2),                     # segt
                pl.BlockSpec((None, block_b, M), lambda i: (i, 0, 0)),  # sel  (per block)
                pl.BlockSpec((None, M, block_b), lambda i: (i, 0, 0)),  # rlvl (per block)
            ],
            out_specs=[
                pl.BlockSpec((M, d_v), lambda i: (i, 0)),
                pl.BlockSpec((None, block_b, L), lambda i: (i, 0, 0)),
            ],
        ),
        compiler_params=pltpu.CompilerParams(
            dimension_semantics=("parallel",)),
    )(x_flat, wqkv, wo.astype(jnp.float32), b_all,
      jnp.asarray(pool), jnp.asarray(expand), jnp.asarray(rrep),
      jnp.asarray(segt), jnp.asarray(sel), jnp.asarray(rlvl))

    return out_flat.reshape(B, L, d_v), psum3.reshape(B, L)


def _reference(x, params, hierchy_struc, h):
    """Pure-JAX replica of the PyTorch forward (mask_matrix=None path)."""
    wq, bq, wk, bk, wv, bv, wo, bo = params
    B, L, _ = x.shape
    d_qk = wq.shape[1]
    d_v = wv.shape[1]
    dq, dv = d_qk // h, d_v // h

    q = (x @ wq + bq).reshape(B, L, h, dq).transpose(0, 2, 1, 3)
    k = (x @ wk + bk).reshape(B, L, h, dq).transpose(0, 2, 1, 3)
    v = (x @ wv + bv).reshape(B, L, h, dv).transpose(0, 2, 1, 3)

    scores = jnp.einsum("bhqd,bhkd->bhqk", q, k) / np.sqrt(dq)
    p = jax.nn.softmax(scores, axis=-1)

    # get_attmask: mask[b, :, i, :] = 1 for b in the i-th hierarchy slice.
    mask = np.zeros((B, h, L, L), np.float32)
    idx = 0
    for i, j in enumerate(hierchy_struc):
        mask[idx:idx + j, :, i, :] = 1.0
        idx += j
    p = p * jnp.asarray(mask)

    attn = jnp.einsum("bhqk,bhkd->bhqd", p, v)
    attn = attn.transpose(0, 2, 1, 3).reshape(B, L, d_v)
    out = attn @ wo + bo

    psum = p.sum(axis=2)                           # (B, h, L): sum over query dim
    psum = psum.transpose(0, 2, 1).mean(axis=2)    # (B, L): mean over heads
    return out, psum


if __name__ == "__main__":
    # d_model = d_model_qk = d_model_v = 32, h = 4, levelcount L = 8,
    # hierchy_struc = (1, 2, 3) -> batch (number of time series) = 6.
    B, L, d_model, d_model_qk, d_model_v, h = 6, 8, 32, 32, 32, 4
    hierchy_struc = (1, 2, 3)

    key = jax.random.PRNGKey(0)
    ks = jax.random.split(key, 9)
    x = jax.random.normal(ks[0], (B, L, d_model), dtype=jnp.float32)

    def _w(k, shape):
        return 0.1 * jax.random.normal(k, shape, dtype=jnp.float32)

    # Weights stored as (in, out); biases as (1, out).
    params = (
        _w(ks[1], (d_model, d_model_qk)), _w(ks[2], (1, d_model_qk)),    # Wq, bq
        _w(ks[3], (d_model, d_model_qk)), _w(ks[4], (1, d_model_qk)),    # Wk, bk
        _w(ks[5], (d_model, d_model_v)),  _w(ks[6], (1, d_model_v)),     # Wv, bv
        _w(ks[7], (d_model_v, d_model_v)), _w(ks[8], (1, d_model_v)),    # Wo, bo
    )

    out, psum = multi_headed_attention(x, params, hierchy_struc, h)
    out, psum = jax.block_until_ready((out, psum))

    # Verify against a pure-JAX f32 replica of the PyTorch semantics (kernel
    # uses bf16 MXU operands for the projection with f32 accumulation).
    ref_out, ref_psum = _reference(x, params, hierchy_struc, h)
    np.testing.assert_allclose(np.asarray(out), np.asarray(ref_out),
                               rtol=2e-2, atol=2e-2)
    np.testing.assert_allclose(np.asarray(psum), np.asarray(ref_psum),
                               rtol=2e-2, atol=2e-2)
    # Replicate the module's internal sanity check: p_attn_sum rows sum to 1.
    # TODO(synk): this runtime assert/print lives host-side here, not in-kernel.
    assert np.all(np.abs(np.asarray(psum).sum(axis=1) - 1.0) <= 0.01)

    print("KERNEL_OK")
</pallas_src>

<mosaic_0001>
module attributes {stable_mosaic.version = 11 : i64} {
  func.func @_mha_kernel(%arg0: i32, %arg1: memref<48x32xbf16, #tpu.memory_space<vmem>>, %arg2: memref<32x96xbf16, #tpu.memory_space<vmem>>, %arg3: memref<32x32xf32, #tpu.memory_space<vmem>>, %arg4: memref<1x128xf32, #tpu.memory_space<vmem>>, %arg5: memref<32x4xf32, #tpu.memory_space<vmem>>, %arg6: memref<4x32xf32, #tpu.memory_space<vmem>>, %arg7: memref<48x6xf32, #tpu.memory_space<vmem>>, %arg8: memref<6x48xf32, #tpu.memory_space<vmem>>, %arg9: memref<1x6x48xf32, #tpu.memory_space<vmem>>, %arg10: memref<1x48x6xf32, #tpu.memory_space<vmem>>, %arg11: memref<48x32xf32, #tpu.memory_space<vmem>>, %arg12: memref<1x6x8xf32, #tpu.memory_space<vmem>>) attributes {dimension_semantics = [#tpu.dimension_semantics<parallel>], iteration_bounds = array<i64: 1>, scalar_prefetch = 0 : i64, scratch_operands = 0 : i64, tpu.core_type = #tpu.core_type<tc>, window_params = [{transform_indices = @transform_0, window_bounds = array<i64: 48, 32>}, {pipeline_mode = #tpu.pipeline_mode<synchronous>, transform_indices = @transform_1, window_bounds = array<i64: 32, 96>}, {pipeline_mode = #tpu.pipeline_mode<synchronous>, transform_indices = @transform_2, window_bounds = array<i64: 32, 32>}, {pipeline_mode = #tpu.pipeline_mode<synchronous>, transform_indices = @transform_3, window_bounds = array<i64: 1, 128>}, {pipeline_mode = #tpu.pipeline_mode<synchronous>, transform_indices = @transform_4, window_bounds = array<i64: 32, 4>}, {pipeline_mode = #tpu.pipeline_mode<synchronous>, transform_indices = @transform_5, window_bounds = array<i64: 4, 32>}, {pipeline_mode = #tpu.pipeline_mode<synchronous>, transform_indices = @transform_6, window_bounds = array<i64: 48, 6>}, {pipeline_mode = #tpu.pipeline_mode<synchronous>, transform_indices = @transform_7, window_bounds = array<i64: 6, 48>}, {transform_indices = @transform_8, window_bounds = array<i64: 1, 6, 48>}, {transform_indices = @transform_9, window_bounds = array<i64: 1, 48, 6>}, {transform_indices = @transform_10, window_bounds = array<i64: 48, 32>}, {transform_indices = @transform_11, window_bounds = array<i64: 1, 6, 8>}]} {
    %c0 = arith.constant 0 : index
    %c0_0 = arith.constant 0 : index
    %0 = vector.load %arg4[%c0, %c0_0] : memref<1x128xf32, #tpu.memory_space<vmem>>, vector<1x128xf32>
    %1 = vector.extract_strided_slice %0 {offsets = [0, 0], sizes = [1, 96], strides = [1, 1]} : vector<1x128xf32> to vector<1x96xf32>
    %2 = vector.extract_strided_slice %0 {offsets = [0, 96], sizes = [1, 32], strides = [1, 1]} : vector<1x128xf32> to vector<1x32xf32>
    %c0_1 = arith.constant 0 : index
    %c0_2 = arith.constant 0 : index
    %3 = vector.load %arg1[%c0_1, %c0_2] : memref<48x32xbf16, #tpu.memory_space<vmem>>, vector<48x32xbf16>
    %c0_3 = arith.constant 0 : index
    %c0_4 = arith.constant 0 : index
    %4 = vector.load %arg2[%c0_3, %c0_4] : memref<32x96xbf16, #tpu.memory_space<vmem>>, vector<32x96xbf16>
    %cst = arith.constant dense<0.000000e+00> : vector<48x96xf32>
    %5 = tpu.matmul %3, %4, %cst {dimension_numbers = #tpu.dot_dimension_numbers<[1], [0], [0], [1], [0, 0, 1, 1], [], []>} : vector<48x32xbf16>, vector<32x96xbf16>, vector<48x96xf32> -> vector<48x96xf32>
    %6 = vector.broadcast %1 : vector<1x96xf32> to vector<48x96xf32>
    %7 = arith.addf %5, %6 : vector<48x96xf32>
    %8 = vector.extract_strided_slice %7 {offsets = [0, 0], sizes = [48, 32], strides = [1, 1]} : vector<48x96xf32> to vector<48x32xf32>
    %9 = vector.extract_strided_slice %7 {offsets = [0, 32], sizes = [48, 32], strides = [1, 1]} : vector<48x96xf32> to vector<48x32xf32>
    %10 = vector.extract_strided_slice %7 {offsets = [0, 64], sizes = [48, 32], strides = [1, 1]} : vector<48x96xf32> to vector<48x32xf32>
    %c0_5 = arith.constant 0 : index
    %c0_6 = arith.constant 0 : index
    %c0_7 = arith.constant 0 : index
    %11 = vector.load %arg9[%c0_5, %c0_6, %c0_7] : memref<1x6x48xf32, #tpu.memory_space<vmem>>, vector<1x6x48xf32>
    %12 = vector.shape_cast %11 : vector<1x6x48xf32> to vector<6x48xf32>
    %cst_8 = arith.constant dense<0.000000e+00> : vector<6x32xf32>
    %13 = tpu.matmul %12, %8, %cst_8 {dimension_numbers = #tpu.dot_dimension_numbers<[1], [0], [0], [1], [0, 0, 1, 1], [], []>} : vector<6x48xf32>, vector<48x32xf32>, vector<6x32xf32> -> vector<6x32xf32>
    %c0_9 = arith.constant 0 : index
    %c0_10 = arith.constant 0 : index
    %14 = vector.load %arg7[%c0_9, %c0_10] : memref<48x6xf32, #tpu.memory_space<vmem>>, vector<48x6xf32>
    %cst_11 = arith.constant dense<0.000000e+00> : vector<48x32xf32>
    %15 = tpu.matmul %14, %13, %cst_11 {dimension_numbers = #tpu.dot_dimension_numbers<[1], [0], [0], [1], [0, 0, 1, 1], [], []>} : vector<48x6xf32>, vector<6x32xf32>, vector<48x32xf32> -> vector<48x32xf32>
    %16 = arith.mulf %15, %9 : vector<48x32xf32>
    %c0_12 = arith.constant 0 : index
    %c0_13 = arith.constant 0 : index
    %17 = vector.load %arg5[%c0_12, %c0_13] : memref<32x4xf32, #tpu.memory_space<vmem>>, vector<32x4xf32>
    %cst_14 = arith.constant dense<0.000000e+00> : vector<48x4xf32>
    %18 = tpu.matmul %16, %17, %cst_14 {dimension_numbers = #tpu.dot_dimension_numbers<[1], [0], [0], [1], [0, 0, 1, 1], [], []>} : vector<48x32xf32>, vector<32x4xf32>, vector<48x4xf32> -> vector<48x4xf32>
    %19 = vector.shape_cast %18 : vector<48x4xf32> to vector<6x8x4xf32>
    %cst_15 = arith.constant dense<0xFF800000> : vector<6x4xf32>
    %20 = vector.multi_reduction <maximumf>, %19, %cst_15 [1] : vector<6x8x4xf32> to vector<6x4xf32>
    %21 = vector.shape_cast %20 : vector<6x4xf32> to vector<6x1x4xf32>
    %22 = vector.broadcast %21 : vector<6x1x4xf32> to vector<6x8x4xf32>
    %23 = arith.subf %19, %22 : vector<6x8x4xf32>
    %24 = math.exp %23 : vector<6x8x4xf32>
    %cst_16 = arith.constant dense<0.000000e+00> : vector<6x4xf32>
    %25 = vector.multi_reduction <add>, %24, %cst_16 [1] : vector<6x8x4xf32> to vector<6x4xf32>
    %26 = vector.shape_cast %25 : vector<6x4xf32> to vector<6x1x4xf32>
    %27 = tpu.reciprocal %26 {approx = true} : vector<6x1x4xf32> -> vector<6x1x4xf32>
    %28 = vector.broadcast %27 : vector<6x1x4xf32> to vector<6x8x4xf32>
    %29 = arith.mulf %24, %28 : vector<6x8x4xf32>
    %cst_17 = arith.constant dense<0.000000e+00> : vector<6x8xf32>
    %30 = vector.multi_reduction <add>, %29, %cst_17 [2] : vector<6x8x4xf32> to vector<6x8xf32>
    %cst_18 = arith.constant 2.500000e-01 : f32
    %31 = vector.broadcast %cst_18 : f32 to vector<6x8xf32>
    %32 = arith.mulf %30, %31 : vector<6x8xf32>
    %c0_19 = arith.constant 0 : index
    %c0_20 = arith.constant 0 : index
    %c0_21 = arith.constant 0 : index
    %33 = vector.load %arg12[%c0_19, %c0_20, %c0_21] : memref<1x6x8xf32, #tpu.memory_space<vmem>>, vector<1x6x8xf32>
    %34 = vector.shape_cast %33 : vector<1x6x8xf32> to vector<6x8xf32>
    %35 = vector.shape_cast %32 : vector<6x8xf32> to vector<1x6x8xf32>
    tpu.vector_store %arg12[%c0_19, %c0_20, %c0_21], %35 {strides = array<i32>} : memref<1x6x8xf32, #tpu.memory_space<vmem>>, vector<1x6x8xf32>,
    %36 = vector.shape_cast %29 : vector<6x8x4xf32> to vector<48x4xf32>
    %c0_22 = arith.constant 0 : index
    %c0_23 = arith.constant 0 : index
    %37 = vector.load %arg6[%c0_22, %c0_23] : memref<4x32xf32, #tpu.memory_space<vmem>>, vector<4x32xf32>
    %cst_24 = arith.constant dense<0.000000e+00> : vector<48x32xf32>
    %38 = tpu.matmul %36, %37, %cst_24 {dimension_numbers = #tpu.dot_dimension_numbers<[1], [0], [0], [1], [0, 0, 1, 1], [], []>} : vector<48x4xf32>, vector<4x32xf32>, vector<48x32xf32> -> vector<48x32xf32>
    %c0_25 = arith.constant 0 : index
    %c0_26 = arith.constant 0 : index
    %39 = vector.load %arg8[%c0_25, %c0_26] : memref<6x48xf32, #tpu.memory_space<vmem>>, vector<6x48xf32>
    %40 = arith.mulf %38, %10 : vector<48x32xf32>
    %cst_27 = arith.constant dense<0.000000e+00> : vector<6x32xf32>
    %41 = tpu.matmul %39, %40, %cst_27 {dimension_numbers = #tpu.dot_dimension_numbers<[1], [0], [0], [1], [0, 0, 1, 1], [], []>} : vector<6x48xf32>, vector<48x32xf32>, vector<6x32xf32> -> vector<6x32xf32>
    %c0_28 = arith.constant 0 : index
    %c0_29 = arith.constant 0 : index
    %42 = vector.load %arg3[%c0_28, %c0_29] : memref<32x32xf32, #tpu.memory_space<vmem>>, vector<32x32xf32>
    %cst_30 = arith.constant dense<0.000000e+00> : vector<6x32xf32>
    %43 = tpu.matmul %41, %42, %cst_30 {dimension_numbers = #tpu.dot_dimension_numbers<[1], [0], [0], [1], [0, 0, 1, 1], [], []>} : vector<6x32xf32>, vector<32x32xf32>, vector<6x32xf32> -> vector<6x32xf32>
    %c0_31 = arith.constant 0 : index
    %c0_32 = arith.constant 0 : index
    %c0_33 = arith.constant 0 : index
    %44 = vector.load %arg10[%c0_31, %c0_32, %c0_33] : memref<1x48x6xf32, #tpu.memory_space<vmem>>, vector<1x48x6xf32>
    %45 = vector.shape_cast %44 : vector<1x48x6xf32> to vector<48x6xf32>
    %cst_34 = arith.constant dense<0.000000e+00> : vector<48x32xf32>
    %46 = tpu.matmul %45, %43, %cst_34 {dimension_numbers = #tpu.dot_dimension_numbers<[1], [0], [0], [1], [0, 0, 1, 1], [], []>} : vector<48x6xf32>, vector<6x32xf32>, vector<48x32xf32> -> vector<48x32xf32>
    %47 = vector.broadcast %2 : vector<1x32xf32> to vector<48x32xf32>
    %48 = arith.addf %46, %47 : vector<48x32xf32>
    %c0_35 = arith.constant 0 : index
    %c0_36 = arith.constant 0 : index
    %49 = vector.load %arg11[%c0_35, %c0_36] : memref<48x32xf32, #tpu.memory_space<vmem>>, vector<48x32xf32>
    tpu.vector_store %arg11[%c0_35, %c0_36], %48 {strides = array<i32>} : memref<48x32xf32, #tpu.memory_space<vmem>>, vector<48x32xf32>,
    return
  }
  func.func @transform_0(%arg0: i32) -> (i32, i32) {
    %c0_i32 = arith.constant 0 : i32
    %c0_i32_0 = arith.constant 0 : i32
    return %arg0, %c0_i32 : i32, i32
  }
  func.func @transform_1(%arg0: i32) -> (i32, i32) {
    %c0_i32 = arith.constant 0 : i32
    %c0_i32_0 = arith.constant 0 : i32
    %c0_i32_1 = arith.constant 0 : i32
    return %c0_i32, %c0_i32_0 : i32, i32
  }
  func.func @transform_2(%arg0: i32) -> (i32, i32) {
    %c0_i32 = arith.constant 0 : i32
    %c0_i32_0 = arith.constant 0 : i32
    %c0_i32_1 = arith.constant 0 : i32
    return %c0_i32, %c0_i32_0 : i32, i32
  }
  func.func @transform_3(%arg0: i32) -> (i32, i32) {
    %c0_i32 = arith.constant 0 : i32
    %c0_i32_0 = arith.constant 0 : i32
    %c0_i32_1 = arith.constant 0 : i32
    return %c0_i32, %c0_i32_0 : i32, i32
  }
  func.func @transform_4(%arg0: i32) -> (i32, i32) {
    %c0_i32 = arith.constant 0 : i32
    %c0_i32_0 = arith.constant 0 : i32
    %c0_i32_1 = arith.constant 0 : i32
    return %c0_i32, %c0_i32_0 : i32, i32
  }
  func.func @transform_5(%arg0: i32) -> (i32, i32) {
    %c0_i32 = arith.constant 0 : i32
    %c0_i32_0 = arith.constant 0 : i32
    %c0_i32_1 = arith.constant 0 : i32
    return %c0_i32, %c0_i32_0 : i32, i32
  }
  func.func @transform_6(%arg0: i32) -> (i32, i32) {
    %c0_i32 = arith.constant 0 : i32
    %c0_i32_0 = arith.constant 0 : i32
    %c0_i32_1 = arith.constant 0 : i32
    return %c0_i32, %c0_i32_0 : i32, i32
  }
  func.func @transform_7(%arg0: i32) -> (i32, i32) {
    %c0_i32 = arith.constant 0 : i32
    %c0_i32_0 = arith.constant 0 : i32
    %c0_i32_1 = arith.constant 0 : i32
    return %c0_i32, %c0_i32_0 : i32, i32
  }
  func.func @transform_8(%arg0: i32) -> (i32, i32, i32) {
    %c0_i32 = arith.constant 0 : i32
    %c0_i32_0 = arith.constant 0 : i32
    %c0_i32_1 = arith.constant 0 : i32
    return %arg0, %c0_i32, %c0_i32_0 : i32, i32, i32
  }
  func.func @transform_9(%arg0: i32) -> (i32, i32, i32) {
    %c0_i32 = arith.constant 0 : i32
    %c0_i32_0 = arith.constant 0 : i32
    %c0_i32_1 = arith.constant 0 : i32
    return %arg0, %c0_i32, %c0_i32_0 : i32, i32, i32
  }
  func.func @transform_10(%arg0: i32) -> (i32, i32) {
    %c0_i32 = arith.constant 0 : i32
    %c0_i32_0 = arith.constant 0 : i32
    return %arg0, %c0_i32 : i32, i32
  }
  func.func @transform_11(%arg0: i32) -> (i32, i32, i32) {
    %c0_i32 = arith.constant 0 : i32
    %c0_i32_0 = arith.constant 0 : i32
    %c0_i32_1 = arith.constant 0 : i32
    return %arg0, %c0_i32, %c0_i32_0 : i32, i32, i32
  }
}

</mosaic_0001>

<llo_original>
// kernel: tpu_custom_call.1
$region0: #{tpu_custom_call.1}
  #allocation0 [shape = 'u32[]', space=smem, size = 0x4, offset = 0x4, fixed_abs, tag = 'smem constant byte address 0x4 - core index']
  #allocation1 [shape = 'u32[144,128]{1,0:T(1,128)}', space=vmem, size = 0x12000, scoped, tag = 'internal scratch']
  %s0 = inlined_call_operand.vmem [shape: bf16[48,32], index: 0, kind: input, shape index: {}]
  %s1 = inlined_call_operand.vmem [shape: bf16[32,96], index: 1, kind: input, shape index: {}]
  %s2 = inlined_call_operand.vmem [shape: f32[32,32], index: 2, kind: input, shape index: {}]
  %s3 = inlined_call_operand.vmem [shape: f32[1,128], index: 3, kind: input, shape index: {}]
  %s4 = inlined_call_operand.vmem [shape: f32[32,4], index: 4, kind: input, shape index: {}]
  %s5 = inlined_call_operand.vmem [shape: f32[4,32], index: 5, kind: input, shape index: {}]
  %s6 = inlined_call_operand.vmem [shape: f32[48,6], index: 6, kind: input, shape index: {}]
  %s7 = inlined_call_operand.vmem [shape: f32[6,48], index: 7, kind: input, shape index: {}]
  %s8 = inlined_call_operand.vmem [shape: f32[1,6,48], index: 8, kind: input, shape index: {}]
  %s9 = inlined_call_operand.vmem [shape: f32[1,48,6], index: 9, kind: input, shape index: {}]
  %s10 = inlined_call_operand.vmem [shape: f32[48,32], index: 10, kind: output, shape index: {0}]
  %s11 = inlined_call_operand.vmem [shape: f32[1,6,8], index: 11, kind: output, shape index: {1}]
  %12 = xla_tuple %s10, %s11
  %s13 = sld [smem:[#allocation0]]
  $region58: #{tpu_custom_call.1} parent=0
    _
  %s15 = ssub.s32 1, %s13
  %s16 = scalar_select 0, %s15, %s13
  // Predicated region
  $region2: #{tpu_custom_call.1} parent=0 // pred_check
    _
  $region3: #{tpu_custom_call.1} parent=0 // pred_check_branch
    %18 = sbr.rel (0) target = $region5
  $region4: #{tpu_custom_call.1} parent=0 // pred_region
    _
  $region5: #{tpu_custom_call.1} parent=0 // pred_fallthru
    _
  // Predicated region
  $region6: #{tpu_custom_call.1} parent=0 // pred_check
    _
  $region7: #{tpu_custom_call.1} parent=0 // pred_check_branch
    %20 = sbr.rel (0) target = $region9
  $region8: #{tpu_custom_call.1} parent=0 // pred_region
    _
  $region9: #{tpu_custom_call.1} parent=0 // pred_fallthru
    _
  // Predicated region
  $region10: #{tpu_custom_call.1} parent=0 // pred_check
    _
  $region11: #{tpu_custom_call.1} parent=0 // pred_check_branch
    %22 = sbr.rel (0) target = $region13
  $region12: #{tpu_custom_call.1} parent=0 // pred_region
    _
  $region13: #{tpu_custom_call.1} parent=0 // pred_fallthru
    _
  // Predicated region
  $region14: #{tpu_custom_call.1} parent=0 // pred_check
    _
  $region15: #{tpu_custom_call.1} parent=0 // pred_check_branch
    %24 = sbr.rel (0) target = $region17
  $region16: #{tpu_custom_call.1} parent=0 // pred_region
    _
  $region17: #{tpu_custom_call.1} parent=0 // pred_fallthru
    _
  // Predicated region
  $region18: #{tpu_custom_call.1} parent=0 // pred_check
    _
  $region19: #{tpu_custom_call.1} parent=0 // pred_check_branch
    %26 = sbr.rel (0) target = $region21
  $region20: #{tpu_custom_call.1} parent=0 // pred_region
    _
  $region21: #{tpu_custom_call.1} parent=0 // pred_fallthru
    _
  // Predicated region
  $region22: #{tpu_custom_call.1} parent=0 // pred_check
    _
  $region23: #{tpu_custom_call.1} parent=0 // pred_check_branch
    %28 = sbr.rel (0) target = $region25
  $region24: #{tpu_custom_call.1} parent=0 // pred_region
    _
  $region25: #{tpu_custom_call.1} parent=0 // pred_fallthru
    _
  // Predicated region
  $region26: #{tpu_custom_call.1} parent=0 // pred_check
    _
  $region27: #{tpu_custom_call.1} parent=0 // pred_check_branch
    %30 = sbr.rel (0) target = $region29
  $region28: #{tpu_custom_call.1} parent=0 // pred_region
    _
  $region29: #{tpu_custom_call.1} parent=0 // pred_fallthru
    _
  // Predicated region
  $region30: #{tpu_custom_call.1} parent=0 // pred_check
    _
  $region31: #{tpu_custom_call.1} parent=0 // pred_check_branch
    %32 = sbr.rel (0) target = $region33
  $region32: #{tpu_custom_call.1} parent=0 // pred_region
    _
  $region33: #{tpu_custom_call.1} parent=0 // pred_fallthru
    _
  // Predicated region
  $region34: #{tpu_custom_call.1} parent=0 // pred_check
    _
  $region35: #{tpu_custom_call.1} parent=0 // pred_check_branch
    %34 = sbr.rel (0) target = $region37
  $region36: #{tpu_custom_call.1} parent=0 // pred_region
    _
  $region37: #{tpu_custom_call.1} parent=0 // pred_fallthru
    _
  // Predicated region
  $region38: #{tpu_custom_call.1} parent=0 // pred_check
    _
  $region39: #{tpu_custom_call.1} parent=0 // pred_check_branch
    %36 = sbr.rel (0) target = $region41
  $region40: #{tpu_custom_call.1} parent=0 // pred_region
    _
  $region41: #{tpu_custom_call.1} parent=0 // pred_fallthru
    _
  %v38 = vld [vmem:[%s3] sm:$0x1]
  %v39 = vld [vmem:[%s0] sm:$0xf]
  %v40 = vld [vmem:[%s0 + $0x4] sm:$0xf]
  %v41 = vld [vmem:[%s0 + $0x8] sm:$0xf]
  %v42 = vld [vmem:[%s0 + $0xc] sm:$0xf]
  %v43 = vld [vmem:[%s0 + $0x10] sm:$0xf]
  %v44 = vld [vmem:[%s0 + $0x14] sm:$0xf]
  %v45 = vld [vmem:[%s1] sm:$0xf]
  %v46 = vld [vmem:[%s1 + $0x4] sm:$0xf]
  %v47 = vld [vmem:[%s1 + $0x8] sm:$0xf]
  %v48 = vld [vmem:[%s1 + $0xc] sm:$0xf]
  %v50 = vlaneseq
  %v51 = vshrl.u32 %v50, 7
  %v52 = vsub.s32 0, %v51
  %v53 = vrot.slane %v38, %v52
  %v61 = vunpack.c.l.b16 %v39
  %v62 = vunpack.c.l.b16 %v40
  %v63 = vunpack.c.l.b16 %v41
  %v64 = vunpack.c.l.b16 %v42
  %v65 = vunpack.c.l.b16 %v43
  %v66 = vunpack.c.l.b16 %v44
  %v67 = vpack.c.b16 %v62, %v61
  %v68 = vpack.c.b16 %v64, %v63
  %v69 = vpack.c.b16 %v66, %v65
  %v74 = vunpack.c.l.b16 %v45
  %v75 = vunpack.c.l.b16 %v46
  %v76 = vunpack.c.l.b16 %v47
  %v77 = vunpack.c.l.b16 %v48
  %v78 = vpack.c.b16 %v75, %v74
  %v79 = vpack.c.b16 %v77, %v76
  %vm82 = vcmask 261120
  %v84 = vsel %vm82, %v67, 0
  %v87 = vsel %vm82, %v68, 0
  %v90 = vsel %vm82, %v69, 0
  %92 = vmatprep.subr.bf16.mxu0 0
  %93 = vmatpush1.bf16.msra.mxu0 %v78
  %94 = vmatprep.subr.bf16.mxu0 0
  %95 = vmatpush1.bf16.msra.mxu0 %v79
  %96 = vmatprep.subr.bf16.mxu0 0
  %97 = vmatpush1.bf16.msra.mxu0 0
  %98 = vmatprep.subr.bf16.mxu0 0
  %99 = vmatpush1.bf16.msra.mxu0 0
  %100 = vmatprep.subr.bf16.mxu0 0
  %101 = vmatpush1.bf16.msra.mxu0 0
  %102 = vmatprep.subr.bf16.mxu0 0
  %103 = vmatpush1.bf16.msra.mxu0 0
  %104 = vmatprep.subr.bf16.mxu0 0
  %105 = vmatpush1.bf16.msra.mxu0 0
  %106 = vmatprep.subr.bf16.mxu0 0
  %107 = vmatpush1.bf16.msra.mxu0 0
  %108 = vmatprep.subr.bf16.mxu0 0
  %109 = vmatpush1.bf16.msra.mxu0 0
  %110 = vmatprep.subr.bf16.mxu0 0
  %111 = vmatpush1.bf16.msra.mxu0 0
  %112 = vmatprep.subr.bf16.mxu0 0
  %113 = vmatpush1.bf16.msra.mxu0 0
  %114 = vmatprep.subr.bf16.mxu0 0
  %115 = vmatpush1.bf16.msra.mxu0 0
  %116 = vmatprep.subr.bf16.mxu0 0
  %117 = vmatpush1.bf16.msra.mxu0 0
  %118 = vmatprep.subr.bf16.mxu0 0
  %119 = vmatpush1.bf16.msra.mxu0 0
  %120 = vmatprep.subr.bf16.mxu0 0
  %121 = vmatpush1.bf16.msra.mxu0 0
  %122 = vmatprep.subr.bf16.mxu0 0
  %123 = vmatpush1.bf16.msra.mxu0 0
  %124 = vmatprep.mubr.bf16.mxu0 0
  %125 = vmatmul.mubr.bf16.gmra.mrb[0].mxu0 %v84
  %v126 = vpop.f32.mrb[0].mxu0
  %v127 = vadd.f32 %v53, %v126
  %v128 = vpop.f32.mrb[0].mxu0
  %v129 = vpop.f32.mrb[0].mxu0
  %v130 = vadd.f32 %v53, %v129
  %v131 = vpop.f32.mrb[0].mxu0
  %132 = vmatprep.mubr.bf16.mxu0 0
  %133 = vmatmul.mubr.bf16.gmra.mrb[0].mxu0 %v87
  %v134 = vpop.f32.mrb[0].mxu0
  %v135 = vadd.f32 %v53, %v134
  %v136 = vpop.f32.mrb[0].mxu0
  %v137 = vpop.f32.mrb[0].mxu0
  %v138 = vadd.f32 %v53, %v137
  %v139 = vpop.f32.mrb[0].mxu0
  %140 = vmatprep.mubr.bf16.mxu0 0
  %141 = vmatmul.mubr.bf16.gmra.mrb[0].mxu0 %v90
  %v142 = vpop.f32.mrb[0].mxu0
  %v143 = vadd.f32 %v53, %v142
  %v144 = vpop.f32.mrb[0].mxu0
  %v145 = vpop.f32.mrb[0].mxu0
  %v146 = vadd.f32 %v53, %v145
  %v147 = vpop.f32.mrb[0].mxu0
  %148 = vdwg.mxu0
  %v149 = vld [vmem:[%s8] sm:$0x3f]
  %vm150 = vcmask 392192
  %v152 = vsel %vm150, %v149, 0
  %154 = vmatprep.subr.mxu0 0.0
  %155 = vmatpush1.msra.mxu0 %v127
  %156 = vmatprep.subr.mxu0 0.0
  %157 = vmatpush1.msra.mxu0 %v130
  %158 = vmatprep.subr.mxu0 0.0
  %159 = vmatpush1.msra.mxu0 %v135
  %160 = vmatprep.subr.mxu0 0.0
  %161 = vmatpush1.msra.mxu0 %v138
  %162 = vmatprep.subr.mxu0 0.0
  %163 = vmatpush1.msra.mxu0 %v143
  %164 = vmatprep.subr.mxu0 0.0
  %165 = vmatpush1.msra.mxu0 %v146
  %166 = vmatprep.subr.mxu0 0.0
  %167 = vmatpush1.msra.mxu0 0.0
  %168 = vmatprep.subr.mxu0 0.0
  %169 = vmatpush1.msra.mxu0 0.0
  %170 = vmatprep.subr.mxu0 0.0
  %171 = vmatpush1.msra.mxu0 0.0
  %172 = vmatprep.subr.mxu0 0.0
  %173 = vmatpush1.msra.mxu0 0.0
  %174 = vmatprep.subr.mxu0 0.0
  %175 = vmatpush1.msra.mxu0 0.0
  %176 = vmatprep.subr.mxu0 0.0
  %177 = vmatpush1.msra.mxu0 0.0
  %178 = vmatprep.subr.mxu0 0.0
  %179 = vmatpush1.msra.mxu0 0.0
  %180 = vmatprep.subr.mxu0 0.0
  %181 = vmatpush1.msra.mxu0 0.0
  %182 = vmatprep.subr.mxu0 0.0
  %183 = vmatpush1.msra.mxu0 0.0
  %184 = vmatprep.subr.mxu0 0.0
  %185 = vmatpush1.msra.mxu0 0.0
  %186 = vmatprep.subr.mxu0 0.0
  %187 = vmatpush1.msra.mxu0 0.0
  %188 = vmatprep.subr.mxu0 0.0
  %189 = vmatpush1.msra.mxu0 0.0
  %190 = vmatprep.subr.mxu0 0.0
  %191 = vmatpush1.msra.mxu0 0.0
  %192 = vmatprep.subr.mxu0 0.0
  %193 = vmatpush1.msra.mxu0 0.0
  %194 = vmatprep.subr.mxu0 0.0
  %195 = vmatpush1.msra.mxu0 0.0
  %196 = vmatprep.subr.mxu0 0.0
  %197 = vmatpush1.msra.mxu0 0.0
  %198 = vmatprep.subr.mxu0 0.0
  %199 = vmatpush1.msra.mxu0 0.0
  %200 = vmatprep.subr.mxu0 0.0
  %201 = vmatpush1.msra.mxu0 0.0
  %202 = vmatprep.subr.mxu0 0.0
  %203 = vmatpush1.msra.mxu0 0.0
  %204 = vmatprep.subr.mxu0 0.0
  %205 = vmatpush1.msra.mxu0 0.0
  %206 = vmatprep.subr.mxu0 0.0
  %207 = vmatpush1.msra.mxu0 0.0
  %208 = vmatprep.subr.mxu0 0.0
  %209 = vmatpush1.msra.mxu0 0.0
  %210 = vmatprep.subr.mxu0 0.0
  %211 = vmatpush1.msra.mxu0 0.0
  %212 = vmatprep.subr.mxu0 0.0
  %213 = vmatpush1.msra.mxu0 0.0
  %214 = vmatprep.subr.mxu0 0.0
  %215 = vmatpush1.msra.mxu0 0.0
  %216 = vmatprep.subr.mxu0 0.0
  %217 = vmatpush1.msra.mxu0 0.0
  %218 = vmatprep.mubr.f32.mxu0 0.0
  %219 = vmatmul.mubr.f32.gmra.mrb[0].mxu0 %v152
  %v220 = vpop.f32.mrb[0].mxu0
  %v221 = vadd.f32 0.0, %v220
  %v222 = vpop.f32.mrb[0].mxu0
  %223 = vdwg.mxu0
  %v224 = vld [vmem:[%s6] sm:$0xff]
  %v225 = vld [vmem:[%s6 + $0x8] sm:$0xff]
  %v226 = vld [vmem:[%s6 + $0x10] sm:$0xff]
  %v227 = vld [vmem:[%s6 + $0x18] sm:$0xff]
  %v228 = vld [vmem:[%s6 + $0x20] sm:$0xff]
  %v229 = vld [vmem:[%s6 + $0x28] sm:$0xff]
  %vm230 = vcmask 48128
  %v232 = vsel %vm230, %v224, 0
  %v235 = vsel %vm230, %v225, 0
  %v238 = vsel %vm230, %v226, 0
  %v241 = vsel %vm230, %v227, 0
  %v244 = vsel %vm230, %v228, 0
  %v247 = vsel %vm230, %v229, 0
  %vm249 = vcmask 1045504
  %v251 = vsel %vm249, %v221, 0
  %253 = vmatprep.subr.mxu0 0.0
  %254 = vmatpush1.msra.mxu0 %v251
  %255 = vmatprep.subr.mxu0 0.0
  %256 = vmatpush1.msra.mxu0 0.0
  %257 = vmatprep.subr.mxu0 0.0
  %258 = vmatpush1.msra.mxu0 0.0
  %259 = vmatprep.subr.mxu0 0.0
  %260 = vmatpush1.msra.mxu0 0.0
  %261 = vmatprep.subr.mxu0 0.0
  %262 = vmatpush1.msra.mxu0 0.0
  %263 = vmatprep.subr.mxu0 0.0
  %264 = vmatpush1.msra.mxu0 0.0
  %265 = vmatprep.subr.mxu0 0.0
  %266 = vmatpush1.msra.mxu0 0.0
  %267 = vmatprep.subr.mxu0 0.0
  %268 = vmatpush1.msra.mxu0 0.0
  %269 = vmatprep.subr.mxu0 0.0
  %270 = vmatpush1.msra.mxu0 0.0
  %271 = vmatprep.subr.mxu0 0.0
  %272 = vmatpush1.msra.mxu0 0.0
  %273 = vmatprep.subr.mxu0 0.0
  %274 = vmatpush1.msra.mxu0 0.0
  %275 = vmatprep.subr.mxu0 0.0
  %276 = vmatpush1.msra.mxu0 0.0
  %277 = vmatprep.subr.mxu0 0.0
  %278 = vmatpush1.msra.mxu0 0.0
  %279 = vmatprep.subr.mxu0 0.0
  %280 = vmatpush1.msra.mxu0 0.0
  %281 = vmatprep.subr.mxu0 0.0
  %282 = vmatpush1.msra.mxu0 0.0
  %283 = vmatprep.subr.mxu0 0.0
  %284 = vmatpush1.msra.mxu0 0.0
  %285 = vmatprep.subr.mxu0 0.0
  %286 = vmatpush1.msra.mxu0 0.0
  %287 = vmatprep.subr.mxu0 0.0
  %288 = vmatpush1.msra.mxu0 0.0
  %289 = vmatprep.subr.mxu0 0.0
  %290 = vmatpush1.msra.mxu0 0.0
  %291 = vmatprep.subr.mxu0 0.0
  %292 = vmatpush1.msra.mxu0 0.0
  %293 = vmatprep.subr.mxu0 0.0
  %294 = vmatpush1.msra.mxu0 0.0
  %295 = vmatprep.subr.mxu0 0.0
  %296 = vmatpush1.msra.mxu0 0.0
  %297 = vmatprep.subr.mxu0 0.0
  %298 = vmatpush1.msra.mxu0 0.0
  %299 = vmatprep.subr.mxu0 0.0
  %300 = vmatpush1.msra.mxu0 0.0
  %301 = vmatprep.subr.mxu0 0.0
  %302 = vmatpush1.msra.mxu0 0.0
  %303 = vmatprep.subr.mxu0 0.0
  %304 = vmatpush1.msra.mxu0 0.0
  %305 = vmatprep.subr.mxu0 0.0
  %306 = vmatpush1.msra.mxu0 0.0
  %307 = vmatprep.subr.mxu0 0.0
  %308 = vmatpush1.msra.mxu0 0.0
  %309 = vmatprep.subr.mxu0 0.0
  %310 = vmatpush1.msra.mxu0 0.0
  %311 = vmatprep.subr.mxu0 0.0
  %312 = vmatpush1.msra.mxu0 0.0
  %313 = vmatprep.subr.mxu0 0.0
  %314 = vmatpush1.msra.mxu0 0.0
  %315 = vmatprep.subr.mxu0 0.0
  %316 = vmatpush1.msra.mxu0 0.0
  %317 = vmatprep.mubr.f32.mxu0 0.0
  %318 = vmatmul.mubr.f32.gmra.mrb[0].mxu0 %v232
  %v319 = vpop.f32.mrb[0].mxu0
  %v320 = vadd.f32 0.0, %v319
  %v321 = vpop.f32.mrb[0].mxu0
  %322 = vmatprep.mubr.f32.mxu0 0.0
  %323 = vmatmul.mubr.f32.gmra.mrb[0].mxu0 %v235
  %v324 = vpop.f32.mrb[0].mxu0
  %v325 = vadd.f32 0.0, %v324
  %v326 = vpop.f32.mrb[0].mxu0
  %327 = vmatprep.mubr.f32.mxu0 0.0
  %328 = vmatmul.mubr.f32.gmra.mrb[0].mxu0 %v238
  %v329 = vpop.f32.mrb[0].mxu0
  %v330 = vadd.f32 0.0, %v329
  %v331 = vpop.f32.mrb[0].mxu0
  %332 = vmatprep.mubr.f32.mxu0 0.0
  %333 = vmatmul.mubr.f32.gmra.mrb[0].mxu0 %v241
  %v334 = vpop.f32.mrb[0].mxu0
  %v335 = vadd.f32 0.0, %v334
  %v336 = vpop.f32.mrb[0].mxu0
  %337 = vmatprep.mubr.f32.mxu0 0.0
  %338 = vmatmul.mubr.f32.gmra.mrb[0].mxu0 %v244
  %v339 = vpop.f32.mrb[0].mxu0
  %v340 = vadd.f32 0.0, %v339
  %v341 = vpop.f32.mrb[0].mxu0
  %342 = vmatprep.mubr.f32.mxu0 0.0
  %343 = vmatmul.mubr.f32.gmra.mrb[0].mxu0 %v247
  %v344 = vpop.f32.mrb[0].mxu0
  %v345 = vadd.f32 0.0, %v344
  %v346 = vpop.f32.mrb[0].mxu0
  %347 = vdwg.mxu0
  %354 = vrot.lane.b32.xlu0 %v127, 96
  %v355 = vpop.permute.xlu0 %354
  %356 = vrot.lane.b32.xlu0 %v130, 96
  %v357 = vpop.permute.xlu0 %356
  %358 = vrot.lane.b32.xlu0 %v135, 96
  %v359 = vpop.permute.xlu0 %358
  %360 = vrot.lane.b32.xlu0 %v138, 96
  %v361 = vpop.permute.xlu0 %360
  %362 = vrot.lane.b32.xlu0 %v143, 96
  %v363 = vpop.permute.xlu0 %362
  %364 = vrot.lane.b32.xlu0 %v146, 96
  %v365 = vpop.permute.xlu0 %364
  %v372 = vmul.f32 %v320, %v355
  %v373 = vmul.f32 %v325, %v357
  %v374 = vmul.f32 %v330, %v359
  %v375 = vmul.f32 %v335, %v361
  %v376 = vmul.f32 %v340, %v363
  %v377 = vmul.f32 %v345, %v365
  %v378 = vld [vmem:[%s4] sm:$0xff]
  %v379 = vld [vmem:[%s4 + $0x8] sm:$0xff]
  %v380 = vld [vmem:[%s4 + $0x10] sm:$0xff]
  %v381 = vld [vmem:[%s4 + $0x18] sm:$0xff]
  %v383 = vsel %vm82, %v372, 0
  %v386 = vsel %vm82, %v373, 0
  %v389 = vsel %vm82, %v374, 0
  %v392 = vsel %vm82, %v375, 0
  %v395 = vsel %vm82, %v376, 0
  %v398 = vsel %vm82, %v377, 0
  %400 = vmatprep.subr.mxu0 0.0
  %401 = vmatpush1.msra.mxu0 %v378
  %402 = vmatprep.subr.mxu0 0.0
  %403 = vmatpush1.msra.mxu0 %v379
  %404 = vmatprep.subr.mxu0 0.0
  %405 = vmatpush1.msra.mxu0 %v380
  %406 = vmatprep.subr.mxu0 0.0
  %407 = vmatpush1.msra.mxu0 %v381
  %408 = vmatprep.subr.mxu0 0.0
  %409 = vmatpush1.msra.mxu0 0.0
  %410 = vmatprep.subr.mxu0 0.0
  %411 = vmatpush1.msra.mxu0 0.0
  %412 = vmatprep.subr.mxu0 0.0
  %413 = vmatpush1.msra.mxu0 0.0
  %414 = vmatprep.subr.mxu0 0.0
  %415 = vmatpush1.msra.mxu0 0.0
  %416 = vmatprep.subr.mxu0 0.0
  %417 = vmatpush1.msra.mxu0 0.0
  %418 = vmatprep.subr.mxu0 0.0
  %419 = vmatpush1.msra.mxu0 0.0
  %420 = vmatprep.subr.mxu0 0.0
  %421 = vmatpush1.msra.mxu0 0.0
  %422 = vmatprep.subr.mxu0 0.0
  %423 = vmatpush1.msra.mxu0 0.0
  %424 = vmatprep.subr.mxu0 0.0
  %425 = vmatpush1.msra.mxu0 0.0
  %426 = vmatprep.subr.mxu0 0.0
  %427 = vmatpush1.msra.mxu0 0.0
  %428 = vmatprep.subr.mxu0 0.0
  %429 = vmatpush1.msra.mxu0 0.0
  %430 = vmatprep.subr.mxu0 0.0
  %431 = vmatpush1.msra.mxu0 0.0
  %432 = vmatprep.subr.mxu0 0.0
  %433 = vmatpush1.msra.mxu0 0.0
  %434 = vmatprep.subr.mxu0 0.0
  %435 = vmatpush1.msra.mxu0 0.0
  %436 = vmatprep.subr.mxu0 0.0
  %437 = vmatpush1.msra.mxu0 0.0
  %438 = vmatprep.subr.mxu0 0.0
  %439 = vmatpush1.msra.mxu0 0.0
  %440 = vmatprep.subr.mxu0 0.0
  %441 = vmatpush1.msra.mxu0 0.0
  %442 = vmatprep.subr.mxu0 0.0
  %443 = vmatpush1.msra.mxu0 0.0
  %444 = vmatprep.subr.mxu0 0.0
  %445 = vmatpush1.msra.mxu0 0.0
  %446 = vmatprep.subr.mxu0 0.0
  %447 = vmatpush1.msra.mxu0 0.0
  %448 = vmatprep.subr.mxu0 0.0
  %449 = vmatpush1.msra.mxu0 0.0
  %450 = vmatprep.subr.mxu0 0.0
  %451 = vmatpush1.msra.mxu0 0.0
  %452 = vmatprep.subr.mxu0 0.0
  %453 = vmatpush1.msra.mxu0 0.0
  %454 = vmatprep.subr.mxu0 0.0
  %455 = vmatpush1.msra.mxu0 0.0
  %456 = vmatprep.subr.mxu0 0.0
  %457 = vmatpush1.msra.mxu0 0.0
  %458 = vmatprep.subr.mxu0 0.0
  %459 = vmatpush1.msra.mxu0 0.0
  %460 = vmatprep.subr.mxu0 0.0
  %461 = vmatpush1.msra.mxu0 0.0
  %462 = vmatprep.subr.mxu0 0.0
  %463 = vmatpush1.msra.mxu0 0.0
  %464 = vmatprep.mubr.f32.mxu0 0.0
  %465 = vmatmul.mubr.f32.gmra.mrb[0].mxu0 %v383
  %v466 = vpop.f32.mrb[0].mxu0
  %v467 = vadd.f32 0.0, %v466
  %v468 = vpop.f32.mrb[0].mxu0
  %469 = vmatprep.mubr.f32.mxu0 0.0
  %470 = vmatmul.mubr.f32.gmra.mrb[0].mxu0 %v386
  %v471 = vpop.f32.mrb[0].mxu0
  %v472 = vadd.f32 0.0, %v471
  %v473 = vpop.f32.mrb[0].mxu0
  %474 = vmatprep.mubr.f32.mxu0 0.0
  %475 = vmatmul.mubr.f32.gmra.mrb[0].mxu0 %v389
  %v476 = vpop.f32.mrb[0].mxu0
  %v477 = vadd.f32 0.0, %v476
  %v478 = vpop.f32.mrb[0].mxu0
  %479 = vmatprep.mubr.f32.mxu0 0.0
  %480 = vmatmul.mubr.f32.gmra.mrb[0].mxu0 %v392
  %v481 = vpop.f32.mrb[0].mxu0
  %v482 = vadd.f32 0.0, %v481
  %v483 = vpop.f32.mrb[0].mxu0
  %484 = vmatprep.mubr.f32.mxu0 0.0
  %485 = vmatmul.mubr.f32.gmra.mrb[0].mxu0 %v395
  %v486 = vpop.f32.mrb[0].mxu0
  %v487 = vadd.f32 0.0, %v486
  %v488 = vpop.f32.mrb[0].mxu0
  %489 = vmatprep.mubr.f32.mxu0 0.0
  %490 = vmatmul.mubr.f32.gmra.mrb[0].mxu0 %v398
  %v491 = vpop.f32.mrb[0].mxu0
  %v492 = vadd.f32 0.0, %v491
  %v493 = vpop.f32.mrb[0].mxu0
  %494 = vdwg.mxu0
  %vm495 = vcmask 31744
  %v496 = vsel %vm495, %v467, -inf
  %v497 = vrot.slane %v496, 4
  %v498 = vmax.f32 %v496, %v497
  %v499 = vrot.slane %v498, 2
  %v500 = vmax.f32 %v498, %v499
  %v501 = vrot.slane %v500, 1
  %v502 = vmax.f32 %v500, %v501
  %v503 = vsel %vm495, %v472, -inf
  %v504 = vrot.slane %v503, 4
  %v505 = vmax.f32 %v503, %v504
  %v506 = vrot.slane %v505, 2
  %v507 = vmax.f32 %v505, %v506
  %v508 = vrot.slane %v507, 1
  %v509 = vmax.f32 %v507, %v508
  %v510 = vsel %vm495, %v477, -inf
  %v511 = vrot.slane %v510, 4
  %v512 = vmax.f32 %v510, %v511
  %v513 = vrot.slane %v512, 2
  %v514 = vmax.f32 %v512, %v513
  %v515 = vrot.slane %v514, 1
  %v516 = vmax.f32 %v514, %v515
  %v517 = vsel %vm495, %v482, -inf
  %v518 = vrot.slane %v517, 4
  %v519 = vmax.f32 %v517, %v518
  %v520 = vrot.slane %v519, 2
  %v521 = vmax.f32 %v519, %v520
  %v522 = vrot.slane %v521, 1
  %v523 = vmax.f32 %v521, %v522
  %v524 = vsel %vm495, %v487, -inf
  %v525 = vrot.slane %v524, 4
  %v526 = vmax.f32 %v524, %v525
  %v527 = vrot.slane %v526, 2
  %v528 = vmax.f32 %v526, %v527
  %v529 = vrot.slane %v528, 1
  %v530 = vmax.f32 %v528, %v529
  %v531 = vsel %vm495, %v492, -inf
  %v532 = vrot.slane %v531, 4
  %v533 = vmax.f32 %v531, %v532
  %v534 = vrot.slane %v533, 2
  %v535 = vmax.f32 %v533, %v534
  %v536 = vrot.slane %v535, 1
  %v537 = vmax.f32 %v535, %v536
  %v538 = vsub.f32 %v467, %v502
  %v539 = vsub.f32 %v472, %v509
  %v540 = vsub.f32 %v477, %v516
  %v541 = vsub.f32 %v482, %v523
  %v542 = vsub.f32 %v487, %v530
  %v543 = vsub.f32 %v492, %v537
  %v544 = vmul.f32 %v538, 1.442695
  %v545 = vpow.pop %v544
  %v546 = vmul.f32 %v539, 1.442695
  %v547 = vpow.pop %v546
  %v548 = vmul.f32 %v540, 1.442695
  %v549 = vpow.pop %v548
  %v550 = vmul.f32 %v541, 1.442695
  %v551 = vpow.pop %v550
  %v552 = vmul.f32 %v542, 1.442695
  %v553 = vpow.pop %v552
  %v554 = vmul.f32 %v543, 1.442695
  %v555 = vpow.pop %v554
  %v556 = vsel %vm495, %v545, 0.0
  %v557 = vrot.slane %v556, 4
  %v558 = vadd.f32 %v556, %v557
  %v559 = vrot.slane %v558, 2
  %v560 = vadd.f32 %v558, %v559
  %v561 = vrot.slane %v560, 1
  %v562 = vadd.f32 %v560, %v561
  %v563 = vsel %vm495, %v547, 0.0
  %v564 = vrot.slane %v563, 4
  %v565 = vadd.f32 %v563, %v564
  %v566 = vrot.slane %v565, 2
  %v567 = vadd.f32 %v565, %v566
  %v568 = vrot.slane %v567, 1
  %v569 = vadd.f32 %v567, %v568
  %v570 = vsel %vm495, %v549, 0.0
  %v571 = vrot.slane %v570, 4
  %v572 = vadd.f32 %v570, %v571
  %v573 = vrot.slane %v572, 2
  %v574 = vadd.f32 %v572, %v573
  %v575 = vrot.slane %v574, 1
  %v576 = vadd.f32 %v574, %v575
  %v577 = vsel %vm495, %v551, 0.0
  %v578 = vrot.slane %v577, 4
  %v579 = vadd.f32 %v577, %v578
  %v580 = vrot.slane %v579, 2
  %v581 = vadd.f32 %v579, %v580
  %v582 = vrot.slane %v581, 1
  %v583 = vadd.f32 %v581, %v582
  %v584 = vsel %vm495, %v553, 0.0
  %v585 = vrot.slane %v584, 4
  %v586 = vadd.f32 %v584, %v585
  %v587 = vrot.slane %v586, 2
  %v588 = vadd.f32 %v586, %v587
  %v589 = vrot.slane %v588, 1
  %v590 = vadd.f32 %v588, %v589
  %v591 = vsel %vm495, %v555, 0.0
  %v592 = vrot.slane %v591, 4
  %v593 = vadd.f32 %v591, %v592
  %v594 = vrot.slane %v593, 2
  %v595 = vadd.f32 %v593, %v594
  %v596 = vrot.slane %v595, 1
  %v597 = vadd.f32 %v595, %v596
  %v598 = vrcp.pop %v562
  %v599 = vrcp.pop %v569
  %v600 = vrcp.pop %v576
  %v601 = vrcp.pop %v583
  %v602 = vrcp.pop %v590
  %v603 = vrcp.pop %v597
  %v604 = vmul.f32 %v545, %v598
  %v605 = vmul.f32 %v547, %v599
  %v606 = vmul.f32 %v549, %v600
  %v607 = vmul.f32 %v551, %v601
  %v608 = vmul.f32 %v553, %v602
  %v609 = vmul.f32 %v555, %v603
  %v610 = vsel %vm495, %v604, 0.0
  %611 = vadd.xlane.f32.xlu0 %v610
  %v612 = vpop.xlane.xlu0 %611
  %v613 = vsel %vm495, %v605, 0.0
  %614 = vadd.xlane.f32.xlu0 %v613
  %v615 = vpop.xlane.xlu0 %614
  %v616 = vsel %vm495, %v606, 0.0
  %617 = vadd.xlane.f32.xlu0 %v616
  %v618 = vpop.xlane.xlu0 %617
  %v619 = vsel %vm495, %v607, 0.0
  %620 = vadd.xlane.f32.xlu0 %v619
  %v621 = vpop.xlane.xlu0 %620
  %v622 = vsel %vm495, %v608, 0.0
  %623 = vadd.xlane.f32.xlu0 %v622
  %v624 = vpop.xlane.xlu0 %623
  %v625 = vsel %vm495, %v609, 0.0
  %626 = vadd.xlane.f32.xlu0 %v625
  %v627 = vpop.xlane.xlu0 %626
  %v628 = vmul.f32 %v612, 0.25
  %v629 = vmul.f32 %v615, 0.25
  %v630 = vmul.f32 %v618, 0.25
  %v631 = vmul.f32 %v621, 0.25
  %v632 = vmul.f32 %v624, 0.25
  %v633 = vmul.f32 %v627, 0.25
  %v640 = vlaneseq
  %v641 = vand.u32 %v640, 127
  %v642 = vlaneseq
  %v643 = vshrl.u32 %v642, 7
  %v644 = vsub.s32 %v641, %v643
  %v645 = vrot.slane %v628, %v644
  %v646 = vlaneseq
  %v647 = vshrl.u32 %v646, 7
  %v648 = vsub.s32 %v641, %v647
  %v649 = vrot.slane %v629, %v648
  %v650 = vlaneseq
  %v651 = vshrl.u32 %v650, 7
  %v652 = vsub.s32 %v641, %v651
  %v653 = vrot.slane %v630, %v652
  %v654 = vlaneseq
  %v655 = vshrl.u32 %v654, 7
  %v656 = vsub.s32 %v641, %v655
  %v657 = vrot.slane %v631, %v656
  %v658 = vlaneseq
  %v659 = vshrl.u32 %v658, 7
  %v660 = vsub.s32 %v641, %v659
  %v661 = vrot.slane %v632, %v660
  %v662 = vlaneseq
  %v663 = vshrl.u32 %v662, 7
  %v664 = vsub.s32 %v641, %v663
  %v665 = vrot.slane %v633, %v664
  %vm666 = vcmask 1041409
  %v667 = vsel %vm666, %v649, %v645
  %vm668 = vcmask 1042434
  %v669 = vsel %vm668, %v653, %v667
  %vm670 = vcmask 1043459
  %v671 = vsel %vm670, %v657, %v669
  %vm672 = vcmask 1044484
  %v673 = vsel %vm672, %v661, %v671
  %vm674 = vcmask 1045509
  %v675 = vsel %vm674, %v665, %v673
  %vm677 = vcmask 62464
  %678 = vst.msk [vmem:[%s11] sm:$0x3f] %vm677, %v675
  %v679 = vld [vmem:[%s5] sm:$0xf]
  %v681 = vsel %vm495, %v604, 0
  %v684 = vsel %vm495, %v605, 0
  %v687 = vsel %vm495, %v606, 0
  %v690 = vsel %vm495, %v607, 0
  %v693 = vsel %vm495, %v608, 0
  %v696 = vsel %vm495, %v609, 0
  %vm698 = vcmask 1043456
  %v700 = vsel %vm698, %v679, 0
  %702 = vmatprep.subr.mxu0 0.0
  %703 = vmatpush1.msra.mxu0 %v700
  %704 = vmatprep.subr.mxu0 0.0
  %705 = vmatpush1.msra.mxu0 0.0
  %706 = vmatprep.subr.mxu0 0.0
  %707 = vmatpush1.msra.mxu0 0.0
  %708 = vmatprep.subr.mxu0 0.0
  %709 = vmatpush1.msra.mxu0 0.0
  %710 = vmatprep.subr.mxu0 0.0
  %711 = vmatpush1.msra.mxu0 0.0
  %712 = vmatprep.subr.mxu0 0.0
  %713 = vmatpush1.msra.mxu0 0.0
  %714 = vmatprep.subr.mxu0 0.0
  %715 = vmatpush1.msra.mxu0 0.0
  %716 = vmatprep.subr.mxu0 0.0
  %717 = vmatpush1.msra.mxu0 0.0
  %718 = vmatprep.subr.mxu0 0.0
  %719 = vmatpush1.msra.mxu0 0.0
  %720 = vmatprep.subr.mxu0 0.0
  %721 = vmatpush1.msra.mxu0 0.0
  %722 = vmatprep.subr.mxu0 0.0
  %723 = vmatpush1.msra.mxu0 0.0
  %724 = vmatprep.subr.mxu0 0.0
  %725 = vmatpush1.msra.mxu0 0.0
  %726 = vmatprep.subr.mxu0 0.0
  %727 = vmatpush1.msra.mxu0 0.0
  %728 = vmatprep.subr.mxu0 0.0
  %729 = vmatpush1.msra.mxu0 0.0
  %730 = vmatprep.subr.mxu0 0.0
  %731 = vmatpush1.msra.mxu0 0.0
  %732 = vmatprep.subr.mxu0 0.0
  %733 = vmatpush1.msra.mxu0 0.0
  %734 = vmatprep.subr.mxu0 0.0
  %735 = vmatpush1.msra.mxu0 0.0
  %736 = vmatprep.subr.mxu0 0.0
  %737 = vmatpush1.msra.mxu0 0.0
  %738 = vmatprep.subr.mxu0 0.0
  %739 = vmatpush1.msra.mxu0 0.0
  %740 = vmatprep.subr.mxu0 0.0
  %741 = vmatpush1.msra.mxu0 0.0
  %742 = vmatprep.subr.mxu0 0.0
  %743 = vmatpush1.msra.mxu0 0.0
  %744 = vmatprep.subr.mxu0 0.0
  %745 = vmatpush1.msra.mxu0 0.0
  %746 = vmatprep.subr.mxu0 0.0
  %747 = vmatpush1.msra.mxu0 0.0
  %748 = vmatprep.subr.mxu0 0.0
  %749 = vmatpush1.msra.mxu0 0.0
  %750 = vmatprep.subr.mxu0 0.0
  %751 = vmatpush1.msra.mxu0 0.0
  %752 = vmatprep.subr.mxu0 0.0
  %753 = vmatpush1.msra.mxu0 0.0
  %754 = vmatprep.subr.mxu0 0.0
  %755 = vmatpush1.msra.mxu0 0.0
  %756 = vmatprep.subr.mxu0 0.0
  %757 = vmatpush1.msra.mxu0 0.0
  %758 = vmatprep.subr.mxu0 0.0
  %759 = vmatpush1.msra.mxu0 0.0
  %760 = vmatprep.subr.mxu0 0.0
  %761 = vmatpush1.msra.mxu0 0.0
  %762 = vmatprep.subr.mxu0 0.0
  %763 = vmatpush1.msra.mxu0 0.0
  %764 = vmatprep.subr.mxu0 0.0
  %765 = vmatpush1.msra.mxu0 0.0
  %766 = vmatprep.mubr.f32.mxu0 0.0
  %767 = vmatmul.mubr.f32.gmra.mrb[0].mxu0 %v681
  %v768 = vpop.f32.mrb[0].mxu0
  %v769 = vadd.f32 0.0, %v768
  %v770 = vpop.f32.mrb[0].mxu0
  %771 = vmatprep.mubr.f32.mxu0 0.0
  %772 = vmatmul.mubr.f32.gmra.mrb[0].mxu0 %v684
  %v773 = vpop.f32.mrb[0].mxu0
  %v774 = vadd.f32 0.0, %v773
  %v775 = vpop.f32.mrb[0].mxu0
  %776 = vmatprep.mubr.f32.mxu0 0.0
  %777 = vmatmul.mubr.f32.gmra.mrb[0].mxu0 %v687
  %v778 = vpop.f32.mrb[0].mxu0
  %v779 = vadd.f32 0.0, %v778
  %v780 = vpop.f32.mrb[0].mxu0
  %781 = vmatprep.mubr.f32.mxu0 0.0
  %782 = vmatmul.mubr.f32.gmra.mrb[0].mxu0 %v690
  %v783 = vpop.f32.mrb[0].mxu0
  %v784 = vadd.f32 0.0, %v783
  %v785 = vpop.f32.mrb[0].mxu0
  %786 = vmatprep.mubr.f32.mxu0 0.0
  %787 = vmatmul.mubr.f32.gmra.mrb[0].mxu0 %v693
  %v788 = vpop.f32.mrb[0].mxu0
  %v789 = vadd.f32 0.0, %v788
  %v790 = vpop.f32.mrb[0].mxu0
  %791 = vmatprep.mubr.f32.mxu0 0.0
  %792 = vmatmul.mubr.f32.gmra.mrb[0].mxu0 %v696
  %v793 = vpop.f32.mrb[0].mxu0
  %v794 = vadd.f32 0.0, %v793
  %v795 = vpop.f32.mrb[0].mxu0
  %796 = vdwg.mxu0
  %v797 = vld [vmem:[%s7] sm:$0x3f]
  %798 = vrot.lane.b32.xlu0 %v127, 64
  %v799 = vpop.permute.xlu0 %798
  %800 = vrot.lane.b32.xlu0 %v130, 64
  %v801 = vpop.permute.xlu0 %800
  %802 = vrot.lane.b32.xlu0 %v135, 64
  %v803 = vpop.permute.xlu0 %802
  %804 = vrot.lane.b32.xlu0 %v138, 64
  %v805 = vpop.permute.xlu0 %804
  %806 = vrot.lane.b32.xlu0 %v143, 64
  %v807 = vpop.permute.xlu0 %806
  %808 = vrot.lane.b32.xlu0 %v146, 64
  %v809 = vpop.permute.xlu0 %808
  %v816 = vmul.f32 %v769, %v799
  %v817 = vmul.f32 %v774, %v801
  %v818 = vmul.f32 %v779, %v803
  %v819 = vmul.f32 %v784, %v805
  %v820 = vmul.f32 %v789, %v807
  %v821 = vmul.f32 %v794, %v809
  %v823 = vsel %vm150, %v797, 0
  %825 = vmatprep.subr.mxu0 0.0
  %826 = vmatpush1.msra.mxu0 %v816
  %827 = vmatprep.subr.mxu0 0.0
  %828 = vmatpush1.msra.mxu0 %v817
  %829 = vmatprep.subr.mxu0 0.0
  %830 = vmatpush1.msra.mxu0 %v818
  %831 = vmatprep.subr.mxu0 0.0
  %832 = vmatpush1.msra.mxu0 %v819
  %833 = vmatprep.subr.mxu0 0.0
  %834 = vmatpush1.msra.mxu0 %v820
  %835 = vmatprep.subr.mxu0 0.0
  %836 = vmatpush1.msra.mxu0 %v821
  %837 = vmatprep.subr.mxu0 0.0
  %838 = vmatpush1.msra.mxu0 0.0
  %839 = vmatprep.subr.mxu0 0.0
  %840 = vmatpush1.msra.mxu0 0.0
  %841 = vmatprep.subr.mxu0 0.0
  %842 = vmatpush1.msra.mxu0 0.0
  %843 = vmatprep.subr.mxu0 0.0
  %844 = vmatpush1.msra.mxu0 0.0
  %845 = vmatprep.subr.mxu0 0.0
  %846 = vmatpush1.msra.mxu0 0.0
  %847 = vmatprep.subr.mxu0 0.0
  %848 = vmatpush1.msra.mxu0 0.0
  %849 = vmatprep.subr.mxu0 0.0
  %850 = vmatpush1.msra.mxu0 0.0
  %851 = vmatprep.subr.mxu0 0.0
  %852 = vmatpush1.msra.mxu0 0.0
  %853 = vmatprep.subr.mxu0 0.0
  %854 = vmatpush1.msra.mxu0 0.0
  %855 = vmatprep.subr.mxu0 0.0
  %856 = vmatpush1.msra.mxu0 0.0
  %857 = vmatprep.subr.mxu0 0.0
  %858 = vmatpush1.msra.mxu0 0.0
  %859 = vmatprep.subr.mxu0 0.0
  %860 = vmatpush1.msra.mxu0 0.0
  %861 = vmatprep.subr.mxu0 0.0
  %862 = vmatpush1.msra.mxu0 0.0
  %863 = vmatprep.subr.mxu0 0.0
  %864 = vmatpush1.msra.mxu0 0.0
  %865 = vmatprep.subr.mxu0 0.0
  %866 = vmatpush1.msra.mxu0 0.0
  %867 = vmatprep.subr.mxu0 0.0
  %868 = vmatpush1.msra.mxu0 0.0
  %869 = vmatprep.subr.mxu0 0.0
  %870 = vmatpush1.msra.mxu0 0.0
  %871 = vmatprep.subr.mxu0 0.0
  %872 = vmatpush1.msra.mxu0 0.0
  %873 = vmatprep.subr.mxu0 0.0
  %874 = vmatpush1.msra.mxu0 0.0
  %875 = vmatprep.subr.mxu0 0.0
  %876 = vmatpush1.msra.mxu0 0.0
  %877 = vmatprep.subr.mxu0 0.0
  %878 = vmatpush1.msra.mxu0 0.0
  %879 = vmatprep.subr.mxu0 0.0
  %880 = vmatpush1.msra.mxu0 0.0
  %881 = vmatprep.subr.mxu0 0.0
  %882 = vmatpush1.msra.mxu0 0.0
  %883 = vmatprep.subr.mxu0 0.0
  %884 = vmatpush1.msra.mxu0 0.0
  %885 = vmatprep.subr.mxu0 0.0
  %886 = vmatpush1.msra.mxu0 0.0
  %887 = vmatprep.subr.mxu0 0.0
  %888 = vmatpush1.msra.mxu0 0.0
  %889 = vmatprep.mubr.f32.mxu0 0.0
  %890 = vmatmul.mubr.f32.gmra.mrb[0].mxu0 %v823
  %v891 = vpop.f32.mrb[0].mxu0
  %v892 = vadd.f32 0.0, %v891
  %v893 = vpop.f32.mrb[0].mxu0
  %894 = vdwg.mxu0
  %v895 = vld [vmem:[%s2] sm:$0xff]
  %v896 = vld [vmem:[%s2 + $0x8] sm:$0xff]
  %v897 = vld [vmem:[%s2 + $0x10] sm:$0xff]
  %v898 = vld [vmem:[%s2 + $0x18] sm:$0xff]
  %v900 = vsel %vm82, %v892, 0
  %902 = vmatprep.subr.mxu0 0.0
  %903 = vmatpush1.msra.mxu0 %v895
  %904 = vmatprep.subr.mxu0 0.0
  %905 = vmatpush1.msra.mxu0 %v896
  %906 = vmatprep.subr.mxu0 0.0
  %907 = vmatpush1.msra.mxu0 %v897
  %908 = vmatprep.subr.mxu0 0.0
  %909 = vmatpush1.msra.mxu0 %v898
  %910 = vmatprep.subr.mxu0 0.0
  %911 = vmatpush1.msra.mxu0 0.0
  %912 = vmatprep.subr.mxu0 0.0
  %913 = vmatpush1.msra.mxu0 0.0
  %914 = vmatprep.subr.mxu0 0.0
  %915 = vmatpush1.msra.mxu0 0.0
  %916 = vmatprep.subr.mxu0 0.0
  %917 = vmatpush1.msra.mxu0 0.0
  %918 = vmatprep.subr.mxu0 0.0
  %919 = vmatpush1.msra.mxu0 0.0
  %920 = vmatprep.subr.mxu0 0.0
  %921 = vmatpush1.msra.mxu0 0.0
  %922 = vmatprep.subr.mxu0 0.0
  %923 = vmatpush1.msra.mxu0 0.0
  %924 = vmatprep.subr.mxu0 0.0
  %925 = vmatpush1.msra.mxu0 0.0
  %926 = vmatprep.subr.mxu0 0.0
  %927 = vmatpush1.msra.mxu0 0.0
  %928 = vmatprep.subr.mxu0 0.0
  %929 = vmatpush1.msra.mxu0 0.0
  %930 = vmatprep.subr.mxu0 0.0
  %931 = vmatpush1.msra.mxu0 0.0
  %932 = vmatprep.subr.mxu0 0.0
  %933 = vmatpush1.msra.mxu0 0.0
  %934 = vmatprep.subr.mxu0 0.0
  %935 = vmatpush1.msra.mxu0 0.0
  %936 = vmatprep.subr.mxu0 0.0
  %937 = vmatpush1.msra.mxu0 0.0
  %938 = vmatprep.subr.mxu0 0.0
  %939 = vmatpush1.msra.mxu0 0.0
  %940 = vmatprep.subr.mxu0 0.0
  %941 = vmatpush1.msra.mxu0 0.0
  %942 = vmatprep.subr.mxu0 0.0
  %943 = vmatpush1.msra.mxu0 0.0
  %944 = vmatprep.subr.mxu0 0.0
  %945 = vmatpush1.msra.mxu0 0.0
  %946 = vmatprep.subr.mxu0 0.0
  %947 = vmatpush1.msra.mxu0 0.0
  %948 = vmatprep.subr.mxu0 0.0
  %949 = vmatpush1.msra.mxu0 0.0
  %950 = vmatprep.subr.mxu0 0.0
  %951 = vmatpush1.msra.mxu0 0.0
  %952 = vmatprep.subr.mxu0 0.0
  %953 = vmatpush1.msra.mxu0 0.0
  %954 = vmatprep.subr.mxu0 0.0
  %955 = vmatpush1.msra.mxu0 0.0
  %956 = vmatprep.subr.mxu0 0.0
  %957 = vmatpush1.msra.mxu0 0.0
  %958 = vmatprep.subr.mxu0 0.0
  %959 = vmatpush1.msra.mxu0 0.0
  %960 = vmatprep.subr.mxu0 0.0
  %961 = vmatpush1.msra.mxu0 0.0
  %962 = vmatprep.subr.mxu0 0.0
  %963 = vmatpush1.msra.mxu0 0.0
  %964 = vmatprep.subr.mxu0 0.0
  %965 = vmatpush1.msra.mxu0 0.0
  %966 = vmatprep.mubr.f32.mxu0 0.0
  %967 = vmatmul.mubr.f32.gmra.mrb[0].mxu0 %v900
  %v968 = vpop.f32.mrb[0].mxu0
  %v969 = vadd.f32 0.0, %v968
  %v970 = vpop.f32.mrb[0].mxu0
  %971 = vdwg.mxu0
  %v972 = vld [vmem:[%s9] sm:$0xff]
  %v973 = vld [vmem:[%s9 + $0x8] sm:$0xff]
  %v974 = vld [vmem:[%s9 + $0x10] sm:$0xff]
  %v975 = vld [vmem:[%s9 + $0x18] sm:$0xff]
  %v976 = vld [vmem:[%s9 + $0x20] sm:$0xff]
  %v977 = vld [vmem:[%s9 + $0x28] sm:$0xff]
  %978 = vrot.lane.b32.xlu0 %v53, 32
  %v979 = vpop.permute.xlu0 %978
  %v982 = vsel %vm230, %v972, 0
  %v985 = vsel %vm230, %v973, 0
  %v988 = vsel %vm230, %v974, 0
  %v991 = vsel %vm230, %v975, 0
  %v994 = vsel %vm230, %v976, 0
  %v997 = vsel %vm230, %v977, 0
  %v1000 = vsel %vm249, %v969, 0
  %1002 = vmatprep.subr.mxu0 0.0
  %1003 = vmatpush1.msra.mxu0 %v1000
  %1004 = vmatprep.subr.mxu0 0.0
  %1005 = vmatpush1.msra.mxu0 0.0
  %1006 = vmatprep.subr.mxu0 0.0
  %1007 = vmatpush1.msra.mxu0 0.0
  %1008 = vmatprep.subr.mxu0 0.0
  %1009 = vmatpush1.msra.mxu0 0.0
  %1010 = vmatprep.subr.mxu0 0.0
  %1011 = vmatpush1.msra.mxu0 0.0
  %1012 = vmatprep.subr.mxu0 0.0
  %1013 = vmatpush1.msra.mxu0 0.0
  %1014 = vmatprep.subr.mxu0 0.0
  %1015 = vmatpush1.msra.mxu0 0.0
  %1016 = vmatprep.subr.mxu0 0.0
  %1017 = vmatpush1.msra.mxu0 0.0
  %1018 = vmatprep.subr.mxu0 0.0
  %1019 = vmatpush1.msra.mxu0 0.0
  %1020 = vmatprep.subr.mxu0 0.0
  %1021 = vmatpush1.msra.mxu0 0.0
  %1022 = vmatprep.subr.mxu0 0.0
  %1023 = vmatpush1.msra.mxu0 0.0
  %1024 = vmatprep.subr.mxu0 0.0
  %1025 = vmatpush1.msra.mxu0 0.0
  %1026 = vmatprep.subr.mxu0 0.0
  %1027 = vmatpush1.msra.mxu0 0.0
  %1028 = vmatprep.subr.mxu0 0.0
  %1029 = vmatpush1.msra.mxu0 0.0
  %1030 = vmatprep.subr.mxu0 0.0
  %1031 = vmatpush1.msra.mxu0 0.0
  %1032 = vmatprep.subr.mxu0 0.0
  %1033 = vmatpush1.msra.mxu0 0.0
  %1034 = vmatprep.subr.mxu0 0.0
  %1035 = vmatpush1.msra.mxu0 0.0
  %1036 = vmatprep.subr.mxu0 0.0
  %1037 = vmatpush1.msra.mxu0 0.0
  %1038 = vmatprep.subr.mxu0 0.0
  %1039 = vmatpush1.msra.mxu0 0.0
  %1040 = vmatprep.subr.mxu0 0.0
  %1041 = vmatpush1.msra.mxu0 0.0
  %1042 = vmatprep.subr.mxu0 0.0
  %1043 = vmatpush1.msra.mxu0 0.0
  %1044 = vmatprep.subr.mxu0 0.0
  %1045 = vmatpush1.msra.mxu0 0.0
  %1046 = vmatprep.subr.mxu0 0.0
  %1047 = vmatpush1.msra.mxu0 0.0
  %1048 = vmatprep.subr.mxu0 0.0
  %1049 = vmatpush1.msra.mxu0 0.0
  %1050 = vmatprep.subr.mxu0 0.0
  %1051 = vmatpush1.msra.mxu0 0.0
  %1052 = vmatprep.subr.mxu0 0.0
  %1053 = vmatpush1.msra.mxu0 0.0
  %1054 = vmatprep.subr.mxu0 0.0
  %1055 = vmatpush1.msra.mxu0 0.0
  %1056 = vmatprep.subr.mxu0 0.0
  %1057 = vmatpush1.msra.mxu0 0.0
  %1058 = vmatprep.subr.mxu0 0.0
  %1059 = vmatpush1.msra.mxu0 0.0
  %1060 = vmatprep.subr.mxu0 0.0
  %1061 = vmatpush1.msra.mxu0 0.0
  %1062 = vmatprep.subr.mxu0 0.0
  %1063 = vmatpush1.msra.mxu0 0.0
  %1064 = vmatprep.subr.mxu0 0.0
  %1065 = vmatpush1.msra.mxu0 0.0
  %1066 = vmatprep.mubr.f32.mxu0 0.0
  %1067 = vmatmul.mubr.f32.gmra.mrb[0].mxu0 %v982
  %v1068 = vpop.f32.mrb[0].mxu0
  %v1069 = vadd.f32 %v979, %v1068
  %v1070 = vpop.f32.mrb[0].mxu0
  %1071 = vmatprep.mubr.f32.mxu0 0.0
  %1072 = vmatmul.mubr.f32.gmra.mrb[0].mxu0 %v985
  %v1073 = vpop.f32.mrb[0].mxu0
  %v1074 = vadd.f32 %v979, %v1073
  %v1075 = vpop.f32.mrb[0].mxu0
  %1076 = vmatprep.mubr.f32.mxu0 0.0
  %1077 = vmatmul.mubr.f32.gmra.mrb[0].mxu0 %v988
  %v1078 = vpop.f32.mrb[0].mxu0
  %v1079 = vadd.f32 %v979, %v1078
  %v1080 = vpop.f32.mrb[0].mxu0
  %1081 = vmatprep.mubr.f32.mxu0 0.0
  %1082 = vmatmul.mubr.f32.gmra.mrb[0].mxu0 %v991
  %v1083 = vpop.f32.mrb[0].mxu0
  %v1084 = vadd.f32 %v979, %v1083
  %v1085 = vpop.f32.mrb[0].mxu0
  %1086 = vmatprep.mubr.f32.mxu0 0.0
  %1087 = vmatmul.mubr.f32.gmra.mrb[0].mxu0 %v994
  %v1088 = vpop.f32.mrb[0].mxu0
  %v1089 = vadd.f32 %v979, %v1088
  %v1090 = vpop.f32.mrb[0].mxu0
  %1091 = vmatprep.mubr.f32.mxu0 0.0
  %1092 = vmatmul.mubr.f32.gmra.mrb[0].mxu0 %v997
  %v1093 = vpop.f32.mrb[0].mxu0
  %v1094 = vadd.f32 %v979, %v1093
  %v1095 = vpop.f32.mrb[0].mxu0
  %1096 = vdwg.mxu0
  %1097 = vst.msk [vmem:[%s10] sm:$0xff] %vm82, %v1069
  %1098 = vst.msk [vmem:[%s10 + $0x8] sm:$0xff] %vm82, %v1074
  %1099 = vst.msk [vmem:[%s10 + $0x10] sm:$0xff] %vm82, %v1079
  %1100 = vst.msk [vmem:[%s10 + $0x18] sm:$0xff] %vm82, %v1084
  %1101 = vst.msk [vmem:[%s10 + $0x20] sm:$0xff] %vm82, %v1089
  %1102 = vst.msk [vmem:[%s10 + $0x28] sm:$0xff] %vm82, %v1094
  // Predicated region
  $region42: #{tpu_custom_call.1} parent=0 // pred_check
    _
  $region43: #{tpu_custom_call.1} parent=0 // pred_check_branch
    %1104 = sbr.rel (0) target = $region45
  $region44: #{tpu_custom_call.1} parent=0 // pred_region
    _
  $region45: #{tpu_custom_call.1} parent=0 // pred_fallthru
    _
  // Predicated region
  $region46: #{tpu_custom_call.1} parent=0 // pred_check
    _
  $region47: #{tpu_custom_call.1} parent=0 // pred_check_branch
    %1106 = sbr.rel (0) target = $region49
  $region48: #{tpu_custom_call.1} parent=0 // pred_region
    _
  $region49: #{tpu_custom_call.1} parent=0 // pred_fallthru
    _
  // Predicated region
  $region50: #{tpu_custom_call.1} parent=0 // pred_check
    _
  $region51: #{tpu_custom_call.1} parent=0 // pred_check_branch
    %1108 = sbr.rel (0) target = $region53
  $region52: #{tpu_custom_call.1} parent=0 // pred_region
    _
  $region53: #{tpu_custom_call.1} parent=0 // pred_fallthru
    _
  // Predicated region
  $region54: #{tpu_custom_call.1} parent=0 // pred_check
    _
  $region55: #{tpu_custom_call.1} parent=0 // pred_check_branch
    %1110 = sbr.rel (0) target = $region57
  $region56: #{tpu_custom_call.1} parent=0 // pred_region
    _
  $region57: #{tpu_custom_call.1} parent=0 // pred_fallthru
    _

</llo_original>
